<compile_context>
chip_gen: v6e
topology: v6e:2x2x1
jax: 0.10.0
libtpu: 0.0.40
codegen_flags: <defaults>
</compile_context>

<pallas_src>
import functools

import jax
import jax.numpy as jnp
from jax.experimental import pallas as pl
from jax.experimental.pallas import tpu as pltpu


def _temperature_param_kernel(T_ref, out_ref, *, coefs, use_scaling,
                              scale_lower, scale_upper):
    """Elementwise: out = scaling(value(T)), value = Horner polynomial.

    `coefs` is a tuple of Python floats (highest degree first), folded into
    the VPU mul/add stream as immediates.
    """
    T = T_ref[...].astype(jnp.float32)
    acc = jnp.full_like(T, coefs[0])
    for c in coefs[1:]:
        acc = acc * T + c
    # scaling(...): default is identity (matches the module's default kwarg);
    # optional affine bounded-scale (lower, upper).
    if use_scaling:
        acc = scale_lower + (scale_upper - scale_lower) * acc
    out_ref[...] = acc.astype(out_ref.dtype)


def temperature_parameter_forward(T, coefs, *, scaling=None,
                                  block_rows=512, block_cols=1024):
    """JAX wrapper mirroring TemperatureParameter.forward(T).

    Args:
      T:       array of any shape/float dtype (temperatures).
      coefs:   1-D array (or sequence) of polynomial coefficients, highest
               degree first — the deterministic "parameter value" definition.
               Baked into the kernel as compile-time immediates.
      scaling: None for identity (module default), or a (lower, upper) tuple
               for an affine bounded-scale function.
      block_rows, block_cols: tile shape of the flattened lane-dense slab.
               Defaults give a 2 MiB f32 block (≈8 MiB double-buffered VMEM),
               safe on v5e/v6e/v7x.
    """
    assert block_cols % 128 == 0 and block_rows % 8 == 0

    coefs_t = tuple(float(c) for c in jax.device_get(
        jnp.asarray(coefs, jnp.float32).reshape(-1)))
    ncoef = len(coefs_t)
    assert ncoef >= 1, "need at least one polynomial coefficient"

    use_scaling = scaling is not None
    lo, hi = (0.0, 1.0) if scaling is None else scaling

    orig_shape = T.shape
    out_dtype = T.dtype
    n = T.size
    flat = T.reshape(-1)

    # --- shape plumbing: flatten + pad to a lane-dense (rows, block_cols) slab ---
    block_elems = block_rows * block_cols
    num_blocks = max(1, pl.cdiv(n, block_elems))
    if num_blocks == 1:
        # Shrink the single block to minimize padding (still (8,128)-aligned).
        rows_needed = max(1, pl.cdiv(n, block_cols))
        block_rows = ((rows_needed + 7) // 8) * 8
        block_elems = block_rows * block_cols
    padded_n = num_blocks * block_elems
    if padded_n != n:
        flat = jnp.pad(flat, (0, padded_n - n))
    x2d = flat.reshape(num_blocks * block_rows, block_cols)

    kernel = functools.partial(
        _temperature_param_kernel,
        coefs=coefs_t,
        use_scaling=use_scaling,
        scale_lower=float(lo),
        scale_upper=float(hi),
    )

    out2d = pl.pallas_call(
        kernel,
        out_shape=jax.ShapeDtypeStruct(x2d.shape, out_dtype),
        grid_spec=pltpu.PrefetchScalarGridSpec(
            num_scalar_prefetch=0,
            grid=(num_blocks,),
            in_specs=[
                pl.BlockSpec((block_rows, block_cols), lambda i: (i, 0)),
            ],
            out_specs=pl.BlockSpec((block_rows, block_cols), lambda i: (i, 0)),
        ),
        compiler_params=pltpu.CompilerParams(
            # Purely elementwise: every block is independent → shard across
            # TensorCores on v7x; no-op on v5e/v6e.
            dimension_semantics=("parallel",)),
        cost_estimate=pl.CostEstimate(
            flops=2 * max(ncoef - 1, 0) * padded_n,
            transcendentals=0,
            bytes_accessed=2 * padded_n * x2d.dtype.itemsize),
    )(x2d)

    return out2d.reshape(-1)[:n].reshape(orig_shape)


if __name__ == "__main__":
    key = jax.random.PRNGKey(0)

    # Small example: a batch of temperatures, 16 x 128 samples in [300, 1000] K.
    rows, cols = 16, 128
    T = jax.random.uniform(key, (rows, cols), dtype=jnp.float32,
                           minval=300.0, maxval=1000.0)

    # Deterministic "parameter" definition: quadratic polynomial in T.
    coefs = jnp.array([1.0e-6, -5.0e-3, 2.0], dtype=jnp.float32)

    # Module default: scaling = identity.
    out = temperature_parameter_forward(T, coefs, scaling=None)
    out = jax.block_until_ready(out)
    ref = jnp.polyval(coefs, T)
    assert out.shape == T.shape and out.dtype == T.dtype
    assert jnp.allclose(out, ref, rtol=1e-5, atol=1e-5)

    # Ragged shape exercising the flatten/pad path + affine bounded scaling.
    T2 = jax.random.uniform(jax.random.PRNGKey(1), (37, 300),
                            dtype=jnp.float32, minval=300.0, maxval=1000.0)
    out2 = jax.block_until_ready(
        temperature_parameter_forward(T2, coefs, scaling=(0.5, 2.0)))
    ref2 = 0.5 + (2.0 - 0.5) * jnp.polyval(coefs, T2)
    assert out2.shape == T2.shape and out2.dtype == T2.dtype
    assert jnp.allclose(out2, ref2, rtol=1e-5, atol=1e-5)

    print("KERNEL_OK")
</pallas_src>

<mosaic_0001>
module attributes {stable_mosaic.version = 11 : i64} {
  func.func @_temperature_param_kernel(%arg0: i32, %arg1: memref<8x1024xf32, #tpu.memory_space<vmem>>, %arg2: memref<8x1024xf32, #tpu.memory_space<vmem>>) attributes {dimension_semantics = [#tpu.dimension_semantics<parallel>], iteration_bounds = array<i64: 1>, scalar_prefetch = 0 : i64, scratch_operands = 0 : i64, tpu.core_type = #tpu.core_type<tc>, window_params = [{transform_indices = @transform_0, window_bounds = array<i64: 8, 1024>}, {transform_indices = @transform_1, window_bounds = array<i64: 8, 1024>}]} {
    %c0 = arith.constant 0 : index
    %c0_0 = arith.constant 0 : index
    %0 = vector.load %arg1[%c0, %c0_0] : memref<8x1024xf32, #tpu.memory_space<vmem>>, vector<8x1024xf32>
    %cst = arith.constant 9.99999997E-7 : f32
    %1 = vector.broadcast %cst : f32 to vector<8x1024xf32>
    %2 = arith.mulf %1, %0 : vector<8x1024xf32>
    %cst_1 = arith.constant -5.000000e-03 : f32
    %3 = vector.broadcast %cst_1 : f32 to vector<8x1024xf32>
    %4 = arith.addf %2, %3 : vector<8x1024xf32>
    %5 = arith.mulf %4, %0 : vector<8x1024xf32>
    %cst_2 = arith.constant 2.000000e+00 : f32
    %6 = vector.broadcast %cst_2 : f32 to vector<8x1024xf32>
    %7 = arith.addf %5, %6 : vector<8x1024xf32>
    %c0_3 = arith.constant 0 : index
    %c0_4 = arith.constant 0 : index
    %8 = vector.load %arg2[%c0_3, %c0_4] : memref<8x1024xf32, #tpu.memory_space<vmem>>, vector<8x1024xf32>
    tpu.vector_store %arg2[%c0_3, %c0_4], %7 {strides = array<i32>} : memref<8x1024xf32, #tpu.memory_space<vmem>>, vector<8x1024xf32>,
    return
  }
  func.func @transform_0(%arg0: i32) -> (i32, i32) {
    %c0_i32 = arith.constant 0 : i32
    %c0_i32_0 = arith.constant 0 : i32
    return %arg0, %c0_i32 : i32, i32
  }
  func.func @transform_1(%arg0: i32) -> (i32, i32) {
    %c0_i32 = arith.constant 0 : i32
    %c0_i32_0 = arith.constant 0 : i32
    return %arg0, %c0_i32 : i32, i32
  }
}

</mosaic_0001>

<llo_original>
// kernel: tpu_custom_call.1
$region0: #{tpu_custom_call.1}
  #allocation0 [shape = 'u32[]', space=smem, size = 0x4, offset = 0x4, fixed_abs, tag = 'smem constant byte address 0x4 - core index']
  #allocation1 [shape = 'u32[144,128]{1,0:T(1,128)}', space=vmem, size = 0x12000, scoped, tag = 'internal scratch']
  %s0 = inlined_call_operand.hbm [shape: f32[8,1024], index: 0, kind: input, shape index: {}]
  %s1 = inlined_call_operand.hbm [shape: f32[8,1024], index: 1, kind: output, shape index: {}]
  %s2 = sld [smem:[#allocation0]]
  $region18: #{tpu_custom_call.1} parent=0
    _
  %s4 = ssub.s32 1, %s2
  %s5 = scalar_select 0, %s4, %s2
  $region1: #{tpu_custom_call.1} parent=0
    #allocation2 [shape = 'u8[32768]{0}', space=vmem, size = 0x8000, scoped, tag = 'input window, operand 0, single buffered']
    #allocation3 [shape = 's32[1]{0}', space=sflag, size = 0x4, scoped, tag = 'scoped memory for tpu_custom_call.1']
    #allocation4 [shape = 's32[1]{0}', space=sflag, size = 0x4, scoped, tag = 'scoped memory for tpu_custom_call.1']
    #allocation5 [shape = 'u8[32768]{0}', space=vmem, size = 0x8000, scoped, tag = 'output window, operand 0, single buffered']
    %6 = vsyncpa [#allocation3], 0
    %7 = vsyncpa [#allocation4], 0
    // Predicated region
    $region2: #{tpu_custom_call.1} parent=1 // pred_check
      _
    $region3: #{tpu_custom_call.1} parent=1 // pred_check_branch
      %9 = sbr.rel (0) target = $region5
    $region4: #{tpu_custom_call.1} parent=1 // pred_region
      %s11 = ssub.s32 1024, 1024
      %12 = vsyncadd [#allocation3], %s11
      %s14 = sshll.u32 [#allocation2], 4
      %s15 = int_to_ptr.vmem [resolvable:$true] %s14
      %17 = dma.hbm_to_vmem [thread:$0]  %s0, 1024, %s15, [#allocation3]
    $region5: #{tpu_custom_call.1} parent=1 // pred_fallthru
      _
    // Predicated region
    $region6: #{tpu_custom_call.1} parent=1 // pred_check
      _
    $region7: #{tpu_custom_call.1} parent=1 // pred_check_branch
      %19 = sbr.rel (0) target = $region9
    $region8: #{tpu_custom_call.1} parent=1 // pred_region
      %20 = dma.done [#allocation3], 1024
    $region9: #{tpu_custom_call.1} parent=1 // pred_fallthru
      _
    %v21 = vld [vmem:[#allocation2] sm:$0xff]
    %v22 = vld [vmem:[#allocation2 + $0x8] sm:$0xff]
    %v23 = vld [vmem:[#allocation2 + $0x10] sm:$0xff]
    %v24 = vld [vmem:[#allocation2 + $0x18] sm:$0xff]
    %v25 = vld [vmem:[#allocation2 + $0x20] sm:$0xff]
    %v26 = vld [vmem:[#allocation2 + $0x28] sm:$0xff]
    %v27 = vld [vmem:[#allocation2 + $0x30] sm:$0xff]
    %v28 = vld [vmem:[#allocation2 + $0x38] sm:$0xff]
    %v29 = vmul.f32 %v21, 1e-06
    %v30 = vmul.f32 %v22, 1e-06
    %v31 = vmul.f32 %v23, 1e-06
    %v32 = vmul.f32 %v24, 1e-06
    %v33 = vmul.f32 %v25, 1e-06
    %v34 = vmul.f32 %v26, 1e-06
    %v35 = vmul.f32 %v27, 1e-06
    %v36 = vmul.f32 %v28, 1e-06
    %v37 = vadd.f32 %v29, -0.005
    %v38 = vadd.f32 %v30, -0.005
    %v39 = vadd.f32 %v31, -0.005
    %v40 = vadd.f32 %v32, -0.005
    %v41 = vadd.f32 %v33, -0.005
    %v42 = vadd.f32 %v34, -0.005
    %v43 = vadd.f32 %v35, -0.005
    %v44 = vadd.f32 %v36, -0.005
    %v45 = vmul.f32 %v37, %v21
    %v46 = vmul.f32 %v38, %v22
    %v47 = vmul.f32 %v39, %v23
    %v48 = vmul.f32 %v40, %v24
    %v49 = vmul.f32 %v41, %v25
    %v50 = vmul.f32 %v42, %v26
    %v51 = vmul.f32 %v43, %v27
    %v52 = vmul.f32 %v44, %v28
    %v53 = vadd.f32 %v45, 2.0
    %v54 = vadd.f32 %v46, 2.0
    %v55 = vadd.f32 %v47, 2.0
    %v56 = vadd.f32 %v48, 2.0
    %v57 = vadd.f32 %v49, 2.0
    %v58 = vadd.f32 %v50, 2.0
    %v59 = vadd.f32 %v51, 2.0
    %v60 = vadd.f32 %v52, 2.0
    %61 = vst [vmem:[#allocation5] sm:$0xff] %v53
    %62 = vst [vmem:[#allocation5 + $0x8] sm:$0xff] %v54
    %63 = vst [vmem:[#allocation5 + $0x10] sm:$0xff] %v55
    %64 = vst [vmem:[#allocation5 + $0x18] sm:$0xff] %v56
    %65 = vst [vmem:[#allocation5 + $0x20] sm:$0xff] %v57
    %66 = vst [vmem:[#allocation5 + $0x28] sm:$0xff] %v58
    %67 = vst [vmem:[#allocation5 + $0x30] sm:$0xff] %v59
    %68 = vst [vmem:[#allocation5 + $0x38] sm:$0xff] %v60
    // Predicated region
    $region10: #{tpu_custom_call.1} parent=1 // pred_check
      _
    $region11: #{tpu_custom_call.1} parent=1 // pred_check_branch
      %70 = sbr.rel (0) target = $region13
    $region12: #{tpu_custom_call.1} parent=1 // pred_region
      %s72 = ssub.s32 1024, 1024
      %73 = vsyncadd [#allocation4], %s72
      %s75 = sshll.u32 [#allocation5], 4
      %s76 = int_to_ptr.vmem [resolvable:$true] %s75
      %78 = dma.vmem_to_hbm [thread:$0]  %s76, 1024, %s1, [#allocation4]
    $region13: #{tpu_custom_call.1} parent=1 // pred_fallthru
      _
    // Predicated region
    $region14: #{tpu_custom_call.1} parent=1 // pred_check
      _
    $region15: #{tpu_custom_call.1} parent=1 // pred_check_branch
      %80 = sbr.rel (0) target = $region17
    $region16: #{tpu_custom_call.1} parent=1 // pred_region
      %81 = dma.done [#allocation4], 1024
    $region17: #{tpu_custom_call.1} parent=1 // pred_fallthru
      _
    %82 = vsyncpa [#allocation3], 1
    %83 = vsyncpa [#allocation4], 1

</llo_original>
